<compile_context>
chip_gen: v7x
topology: tpu7x:2x2x1
jax: 0.10.0
libtpu: 0.0.40
codegen_flags: <defaults>
</compile_context>

<pallas_src>
import jax
import jax.numpy as jnp
from jax.experimental import pallas as pl
from jax.experimental.pallas import tpu as pltpu


def _round_up(x: int, m: int) -> int:
    return ((x + m - 1) // m) * m


def _pick_tile(dim: int, target: int, align: int) -> int:
    """Largest multiple of `align` that divides `dim` and is <= target; else full dim."""
    if dim <= target:
        return dim
    t = (min(target, dim) // align) * align
    while t >= align:
        if dim % t == 0:
            return t
        t -= align
    return dim  # full dim is always a legal block size


def _make_kernel(resident_features: bool, separate_acc: bool, tk: int):
    """Build the bmm kernel for the chosen feature-block mode / accumulator mode."""

    def _body(a_ref, f_ref, o_ref, acc_ref):
        # grid = (B//bb, N//tm, D_pad//td, N//tk); reduction axis k is last.
        k = pl.program_id(3)

        if resident_features:
            # f_ref is the full-K slab (bb, N, td); slice the tk chunk in VMEM.
            start = pl.multiple_of(k * tk, tk)
            f_blk = f_ref[:, pl.ds(start, tk), :]
        else:
            f_blk = f_ref[...]  # (bb, tk, td)

        partial = jnp.einsum(
            "bmk,bkd->bmd", a_ref[...], f_blk,
            preferred_element_type=jnp.float32)

        tgt = acc_ref if separate_acc else o_ref  # o_ref is f32-resident across k

        @pl.when(k == 0)
        def _():
            tgt[...] = partial.astype(tgt.dtype)

        @pl.when(k > 0)
        def _():
            tgt[...] += partial.astype(tgt.dtype)

        if separate_acc:
            @pl.when(k == pl.num_programs(3) - 1)
            def _():
                o_ref[...] = acc_ref[...].astype(o_ref.dtype)

    if separate_acc:
        def kernel(a_ref, f_ref, o_ref, acc_ref):
            _body(a_ref, f_ref, o_ref, acc_ref)
    else:
        def kernel(a_ref, f_ref, o_ref):
            _body(a_ref, f_ref, o_ref, None)
    return kernel


def _vmem_budget():
    """(per-step double-buffered footprint budget, physical VMEM capacity)."""
    cap = 64 * 1024 * 1024  # conservative default = v7x per-TC VMEM
    try:
        info = pltpu.get_tpu_info()
        cap = int(getattr(info, "vmem_capacity_bytes", cap)) or cap
    except Exception:
        pass
    cap = max(cap, 32 * 1024 * 1024)
    budget = min(cap // 2, 48 * 1024 * 1024)
    return budget, cap


def _select_config(B, N, D_pad, isz, out_isz, needs_acc, budget):
    """Choose (bb, tm, tk, td, resident_features, footprint)."""
    align_m = {1: 32, 2: 16}.get(isz, 8)

    # Output-row tile (sublane axis of A/out).
    tm = _pick_tile(N, 1024, 128)
    if tm == N and N > 1024:
        tm = _pick_tile(N, 1024, align_m)
    # Reduction tile (lane axis of A): prefer 256-multiples, else 128.
    tk = _pick_tile(N, 1024, 256)
    if tk == N and N > 1024:
        tk = _pick_tile(N, 1024, 128)

    def footprint(bb, tm_, tk_, td_, resident):
        f_rows = N if resident else tk_
        fp = 2 * bb * tm_ * tk_ * isz          # A blocks (double-buffered)
        fp += 2 * bb * f_rows * td_ * isz      # feature blocks
        fp += 2 * bb * tm_ * td_ * out_isz     # output blocks
        if needs_acc:
            fp += bb * tm_ * td_ * 4           # f32 accumulator scratch
        return fp

    td_small = _pick_tile(D_pad, 512, 128)
    tm_small = _pick_tile(N, 256, 128)
    tk_small = _pick_tile(N, 512, 128)

    configs = [
        (True,  D_pad,    tm,       tk),        # resident features (no re-fetch)
        (False, D_pad,    tm,       tk),        # streamed per-k features
        (False, td_small, tm,       tk),        # + tile D
        (False, td_small, tm_small, tk_small),  # + shrink tm/tk
    ]
    bb_cands = [c for c in range(min(B, 8), 0, -1) if B % c == 0]

    for resident, td, tm_c, tk_c in configs:
        # Keep >= 2 parallel grid steps (megacore / dual-TC) when they exist.
        base_parallel = B * (N // tm_c) * (D_pad // td)
        for bb in bb_cands:
            if base_parallel >= 2 and (B // bb) * (N // tm_c) * (D_pad // td) < 2:
                continue
            fp = footprint(bb, tm_c, tk_c, td, resident)
            if fp <= budget:
                return bb, tm_c, tk_c, td, resident, fp

    # Last resort (extremely tight budgets): smallest config, bb = 1.
    fp = footprint(1, tm_small, tk_small, td_small, False)
    return 1, tm_small, tk_small, td_small, False, fp


def mean_aggregator(features: jax.Array, A: jax.Array) -> jax.Array:
    """GraphSAGE MeanAggregator forward: out = bmm(A, features)."""
    B, N, D = features.shape
    assert A.shape == (B, N, N), (
        f"A shape {A.shape} incompatible with features {features.shape}")

    dtype = jnp.promote_types(features.dtype, A.dtype)
    features = features.astype(dtype)
    A = A.astype(dtype)
    out_dtype = dtype
    isz = jnp.dtype(dtype).itemsize
    out_isz = jnp.dtype(out_dtype).itemsize

    # Pad the feature/output lane dim to a multiple of 128 (lane-dense stores).
    D_pad = _round_up(D, 128)
    if D_pad != D:
        features = jnp.pad(features, ((0, 0), (0, 0), (0, D_pad - D)))

    needs_acc = out_dtype != jnp.float32
    budget, vmem_cap = _vmem_budget()
    bb, tm, tk, td, resident, fp = _select_config(
        B, N, D_pad, isz, out_isz, needs_acc, budget)

    grid = (B // bb, N // tm, D_pad // td, N // tk)

    if resident:
        f_spec = pl.BlockSpec((bb, N, td), lambda b, i, d, k: (b, 0, d))
    else:
        f_spec = pl.BlockSpec((bb, tk, td), lambda b, i, d, k: (b, k, d))

    in_specs = [
        pl.BlockSpec((bb, tm, tk), lambda b, i, d, k: (b, i, k)),  # A
        f_spec,                                                    # features
    ]
    out_specs = pl.BlockSpec((bb, tm, td), lambda b, i, d, k: (b, i, d))
    scratch_shapes = ([pltpu.VMEM((bb, tm, td), jnp.float32)] if needs_acc else [])

    # Realistic HBM traffic (including re-read factors) for XLA's scheduler.
    a_reads = D_pad // td
    f_reads = 1 if (resident and D_pad == td) else (N // tm)
    cost = pl.CostEstimate(
        flops=2 * B * N * N * D_pad,
        transcendentals=0,
        bytes_accessed=int(B * N * N * isz * a_reads
                           + B * N * D_pad * isz * f_reads
                           + B * N * D_pad * out_isz),
    )

    vmem_limit = max(fp + (4 << 20), 32 << 20)
    vmem_limit = int(min(vmem_limit, vmem_cap * 9 // 10))

    out = pl.pallas_call(
        _make_kernel(resident, needs_acc, tk),
        out_shape=jax.ShapeDtypeStruct((B, N, D_pad), out_dtype),
        grid_spec=pltpu.PrefetchScalarGridSpec(
            num_scalar_prefetch=0,
            grid=grid,
            in_specs=in_specs,
            out_specs=out_specs,
            scratch_shapes=scratch_shapes,
        ),
        compiler_params=pltpu.CompilerParams(
            dimension_semantics=("parallel", "parallel", "parallel", "arbitrary"),
            vmem_limit_bytes=vmem_limit,
        ),
        cost_estimate=cost,
    )(A, features)

    if D_pad != D:
        out = out[..., :D]
    return out


if __name__ == "__main__":
    key = jax.random.PRNGKey(0)
    k_a, k_f = jax.random.split(key)

    # --- main test: B=2 graphs, N=128 nodes, D=128 feature dim (f32) ---------
    B, N, D = 2, 128, 128
    A_raw = (jax.random.uniform(k_a, (B, N, N), dtype=jnp.float32) > 0.7).astype(jnp.float32)
    A = A_raw / jnp.clip(A_raw.sum(axis=-1, keepdims=True), 1.0, None)
    features = jax.random.normal(k_f, (B, N, D), dtype=jnp.float32)

    out = jax.block_until_ready(mean_aggregator(features, A))
    ref = jnp.einsum("bij,bjd->bid", A, features)
    assert out.shape == (B, N, D)
    assert jnp.allclose(out, ref, atol=1e-4, rtol=1e-4), "mismatch vs reference bmm (f32)"

    # --- bf16 path (f32 accumulation via scratch) -----------------------------
    A16 = A.astype(jnp.bfloat16)
    F16 = features.astype(jnp.bfloat16)
    out16 = jax.block_until_ready(mean_aggregator(F16, A16))
    ref16 = jnp.einsum("bij,bjd->bid",
                       A16.astype(jnp.float32), F16.astype(jnp.float32))
    assert out16.dtype == jnp.bfloat16
    assert jnp.allclose(out16.astype(jnp.float32), ref16, atol=3e-2, rtol=3e-2), \
        "mismatch vs reference bmm (bf16)"

    # --- non-128-multiple feature dim exercises the D-padding path ------------
    B2, N2, D2 = 2, 64, 96
    A2_raw = (jax.random.uniform(k_a, (B2, N2, N2), dtype=jnp.float32) > 0.5).astype(jnp.float32)
    A2 = A2_raw / jnp.clip(A2_raw.sum(axis=-1, keepdims=True), 1.0, None)
    F2 = jax.random.normal(k_f, (B2, N2, D2), dtype=jnp.float32)
    out2 = jax.block_until_ready(mean_aggregator(F2, A2))
    ref2 = jnp.einsum("bij,bjd->bid", A2, F2)
    assert out2.shape == (B2, N2, D2)
    assert jnp.allclose(out2, ref2, atol=1e-4, rtol=1e-4), "mismatch vs reference bmm (padded D)"

    print("KERNEL_OK")
</pallas_src>

<mosaic_0001>
module attributes {stable_mosaic.version = 11 : i64} {
  func.func @kernel(%arg0: i32, %arg1: i32, %arg2: i32, %arg3: i32, %arg4: memref<1x128x128xf32, #tpu.memory_space<vmem>>, %arg5: memref<1x128x128xf32, #tpu.memory_space<vmem>>, %arg6: memref<1x128x128xf32, #tpu.memory_space<vmem>>) attributes {dimension_semantics = [#tpu.dimension_semantics<parallel>, #tpu.dimension_semantics<parallel>, #tpu.dimension_semantics<parallel>, #tpu.dimension_semantics<arbitrary>], iteration_bounds = array<i64: 2, 1, 1, 1>, scalar_prefetch = 0 : i64, scratch_operands = 0 : i64, tpu.core_type = #tpu.core_type<tc>, window_params = [{transform_indices = @transform_0, window_bounds = array<i64: 1, 128, 128>}, {transform_indices = @transform_1, window_bounds = array<i64: 1, 128, 128>}, {transform_indices = @transform_2, window_bounds = array<i64: 1, 128, 128>}]} {
    %c128_i32 = arith.constant 128 : i32
    %0 = arith.muli %arg3, %c128_i32 : i32
    %1 = tpu.assume_multiple %0, 128 : i32
    %c0 = arith.constant 0 : index
    %2 = arith.index_cast %1 : i32 to index
    %c0_0 = arith.constant 0 : index
    %3 = vector.load %arg5[%c0, %2, %c0_0] : memref<1x128x128xf32, #tpu.memory_space<vmem>>, vector<1x128x128xf32>
    %c0_1 = arith.constant 0 : index
    %c0_2 = arith.constant 0 : index
    %c0_3 = arith.constant 0 : index
    %4 = vector.load %arg4[%c0_1, %c0_2, %c0_3] : memref<1x128x128xf32, #tpu.memory_space<vmem>>, vector<1x128x128xf32>
    "tpu.trace_start"() <{level = 10 : i32, message = "bmk,bkd->bmd"}> : () -> ()
    %cst = arith.constant dense<0.000000e+00> : vector<1x128x128xf32>
    %5 = tpu.matmul %4, %3, %cst {dimension_numbers = #tpu.dot_dimension_numbers<[2], [1], [1], [2], [0, 0, 0, 1, 1, 2], [0], [0]>} : vector<1x128x128xf32>, vector<1x128x128xf32>, vector<1x128x128xf32> -> vector<1x128x128xf32>
    %c0_i32 = arith.constant 0 : i32
    "tpu.trace_stop"() : () -> ()
    %6 = arith.cmpi eq, %arg3, %c0_i32 : i32
    %7 = arith.extui %6 : i1 to i32
    %c0_i32_4 = arith.constant 0 : i32
    %8 = arith.cmpi ne, %7, %c0_i32_4 : i32
    scf.if %8 {
      %c0_7 = arith.constant 0 : index
      %c0_8 = arith.constant 0 : index
      %c0_9 = arith.constant 0 : index
      %12 = vector.load %arg6[%c0_7, %c0_8, %c0_9] : memref<1x128x128xf32, #tpu.memory_space<vmem>>, vector<1x128x128xf32>
      tpu.vector_store %arg6[%c0_7, %c0_8, %c0_9], %5 {strides = array<i32>} : memref<1x128x128xf32, #tpu.memory_space<vmem>>, vector<1x128x128xf32>,
    } else {
    }
    %c0_i32_5 = arith.constant 0 : i32
    %9 = arith.cmpi sgt, %arg3, %c0_i32_5 : i32
    %10 = arith.extui %9 : i1 to i32
    %c0_i32_6 = arith.constant 0 : i32
    %11 = arith.cmpi ne, %10, %c0_i32_6 : i32
    scf.if %11 {
      %c0_7 = arith.constant 0 : index
      %c0_8 = arith.constant 0 : index
      %c0_9 = arith.constant 0 : index
      %12 = vector.load %arg6[%c0_7, %c0_8, %c0_9] : memref<1x128x128xf32, #tpu.memory_space<vmem>>, vector<1x128x128xf32>
      %13 = arith.addf %12, %5 : vector<1x128x128xf32>
      %c0_10 = arith.constant 0 : index
      %c0_11 = arith.constant 0 : index
      %c0_12 = arith.constant 0 : index
      %14 = vector.load %arg6[%c0_10, %c0_11, %c0_12] : memref<1x128x128xf32, #tpu.memory_space<vmem>>, vector<1x128x128xf32>
      tpu.vector_store %arg6[%c0_10, %c0_11, %c0_12], %13 {strides = array<i32>} : memref<1x128x128xf32, #tpu.memory_space<vmem>>, vector<1x128x128xf32>,
    } else {
    }
    return
  }
  func.func @transform_0(%arg0: i32, %arg1: i32, %arg2: i32, %arg3: i32) -> (i32, i32, i32) {
    %c0_i32 = arith.constant 0 : i32
    return %arg0, %arg1, %arg3 : i32, i32, i32
  }
  func.func @transform_1(%arg0: i32, %arg1: i32, %arg2: i32, %arg3: i32) -> (i32, i32, i32) {
    %c0_i32 = arith.constant 0 : i32
    %c0_i32_0 = arith.constant 0 : i32
    return %arg0, %c0_i32, %arg2 : i32, i32, i32
  }
  func.func @transform_2(%arg0: i32, %arg1: i32, %arg2: i32, %arg3: i32) -> (i32, i32, i32) {
    %c0_i32 = arith.constant 0 : i32
    return %arg0, %arg1, %arg2 : i32, i32, i32
  }
}

</mosaic_0001>

<llo_original>
// kernel: tpu_custom_call.1
$region0: #{tpu_custom_call.1}
  #allocation0 [shape = 'u32[]', space=smem, size = 0x4, offset = 0x4, fixed_abs, tag = 'smem constant byte address 0x4 - core index']
  #allocation1 [shape = 'u32[144,128]{1,0:T(1,128)}', space=vmem, size = 0x12000, scoped, tag = 'internal scratch']
  %s0 = inlined_call_operand.hbm [shape: f32[2,128,128], index: 0, kind: input, shape index: {}]
  %s1 = inlined_call_operand.hbm [shape: f32[2,128,128], index: 1, kind: input, shape index: {}]
  %s2 = inlined_call_operand.hbm [shape: f32[2,128,128], index: 2, kind: output, shape index: {}]
  %s3 = sld [smem:[#allocation0]]
  $region57: #{tpu_custom_call.1} parent=0
    _
  %s5 = ssub.s32 1, %s3
  %s6 = scalar_select 0, %s5, %s3
  $region1: #{tpu_custom_call.1} parent=0
    #allocation2 [shape = 'u8[131072]{0}', space=vmem, size = 0x20000, scoped, tag = 'input window, operand 0']
    #allocation3 [shape = 's32[2]{0}', space=sflag, size = 0x8, scoped, tag = 'scoped memory for tpu_custom_call.1']
    #allocation4 [shape = 's32[2]{0}', space=sflag, size = 0x8, scoped, tag = 'scoped memory for tpu_custom_call.1']
    #allocation5 [shape = 'u8[131072]{0}', space=vmem, size = 0x20000, scoped, tag = 'input window, operand 1']
    #allocation6 [shape = 's32[2]{0}', space=sflag, size = 0x8, scoped, tag = 'scoped memory for tpu_custom_call.1']
    #allocation7 [shape = 'u8[131072]{0}', space=vmem, size = 0x20000, scoped, tag = 'output window, operand 0']
    %7 = vsyncpa [#allocation3], 0
    %s8 = scalar_lea.sflag [#allocation3], 1
    %9 = vsyncpa %s8, 0
    %10 = vsyncpa [#allocation6], 0
    %s11 = scalar_lea.sflag [#allocation6], 1
    %12 = vsyncpa %s11, 0
    %13 = vsyncpa [#allocation4], 0
    %s14 = scalar_lea.sflag [#allocation4], 1
    %15 = vsyncpa %s14, 0
    loop: start=0, step=1, limit=4
    $region2: #{tpu_custom_call.1} parent=1 // loop_pre_header
      _
    $region3: #{tpu_custom_call.1} parent=1 // loop_header
      %s17 = sphi 0, %s21
      %p18 = scmp.ge.s32.totalorder %s17, 4
      %s24 = sphi 0, %s50
      %s25 = sphi 0, %s46
      %s26 = sphi 0, %s42
      %s27 = sphi 0, %s38
      %s28 = sphi 0, %s24
      %s29 = sphi 0, %s25
      %s30 = sphi 0, %s26
      %s31 = sphi 0, %s27
      %s32 = sphi 0, %s28
      %s33 = sphi 0, %s29
      %s34 = sphi 0, %s30
      %s35 = sphi 0, %s31
      %s57 = sphi 0, %s59
      %s60 = sphi 0, %s57
      %s61 = sphi 0, %s60
      %s77 = sphi 0, %s61
      %s85 = sphi 0, %s87
      %s88 = sphi 0, %s85
      %s89 = sphi 0, %s88
      %s105 = sphi 0, %s89
      %s115 = sphi 0, %s117
      %s118 = sphi 0, %s115
      %s119 = sphi 0, %s118
      %s135 = sphi 0, %s119
    $region4: #{tpu_custom_call.1} parent=1 // loop_header_branch
      %20 = sbr.rel (%p18) target = $region8
    $region5: #{tpu_custom_call.1} parent=1 // loop_body
      %s22 = ssub.s32 %s17, 1
      %s23 = ssub.s32 %s17, 2
      %s36 = sadd.s32 1, %s27
      %p37 = scmp.ge.s32.totalorder %s36, 1
      %s38 = scalar_select %p37, 0, %s36
      %s39 = sadd.s32 1, %s26
      %s40 = scalar_select %p37, %s39, %s26
      %p41 = scmp.ge.s32.totalorder %s40, 1
      %s42 = scalar_select %p41, 0, %s40
      %s43 = sadd.s32 1, %s25
      %s44 = scalar_select %p41, %s43, %s25
      %p45 = scmp.ge.s32.totalorder %s44, 1
      %s46 = scalar_select %p45, 0, %s44
      %s47 = sadd.s32 1, %s24
      %s48 = scalar_select %p45, %s47, %s24
      %p49 = scmp.ge.s32.totalorder %s48, 2
      %s50 = scalar_select %p49, 0, %s48
      %s51 = ssub.s32 %s24, %s50
      %s52 = ssub.s32 %s25, %s46
      %s53 = sor.u32 %s51, %s52
      %s54 = ssub.s32 %s27, %s38
      %s55 = sor.u32 %s53, %s54
      %p56 = scmp.eq.s32.totalorder %s55, 0
      %s58 = sadd.s32 %s57, 1
      %s59 = scalar_select %p56, %s57, %s58
      %p62 = pneg %p56
      %p63 = scmp.eq.s32.totalorder %s17, 1
      %p64 = por %p62, %p63
      %p65 = scmp.ne.s32.totalorder %s57, %s60
      %p66 = scmp.eq.s32.totalorder %s17, 0
      %p67 = por %p65, %p66
      %p68 = scmp.ne.s32.totalorder %s57, %s60
      %p69 = scmp.eq.s32.totalorder %s22, 1
      %p70 = por %p68, %p69
      %p71 = scmp.ne.s32.totalorder %s60, %s61
      %p72 = scmp.eq.s32.totalorder %s22, 0
      %p73 = por %p71, %p72
      %p74 = scmp.ne.s32.totalorder %s60, %s61
      %p75 = scmp.eq.s32.totalorder %s23, 1
      %p76 = por %p74, %p75
      %p78 = scmp.ne.s32.totalorder %s61, %s77
      %p79 = scmp.eq.s32.totalorder %s23, 0
      %p80 = por %p78, %p79
      %s81 = ssub.s32 %s24, %s50
      %s82 = ssub.s32 %s26, %s42
      %s83 = sor.u32 %s81, %s82
      %p84 = scmp.eq.s32.totalorder %s83, 0
      %s86 = sadd.s32 %s85, 1
      %s87 = scalar_select %p84, %s85, %s86
      %p90 = pneg %p84
      %p91 = scmp.eq.s32.totalorder %s17, 1
      %p92 = por %p90, %p91
      %p93 = scmp.ne.s32.totalorder %s85, %s88
      %p94 = scmp.eq.s32.totalorder %s17, 0
      %p95 = por %p93, %p94
      %p96 = scmp.ne.s32.totalorder %s85, %s88
      %p97 = scmp.eq.s32.totalorder %s22, 1
      %p98 = por %p96, %p97
      %p99 = scmp.ne.s32.totalorder %s88, %s89
      %p100 = scmp.eq.s32.totalorder %s22, 0
      %p101 = por %p99, %p100
      %p102 = scmp.ne.s32.totalorder %s88, %s89
      %p103 = scmp.eq.s32.totalorder %s23, 1
      %p104 = por %p102, %p103
      %p106 = scmp.ne.s32.totalorder %s89, %s105
      %p107 = scmp.eq.s32.totalorder %s23, 0
      %p108 = por %p106, %p107
      %s109 = ssub.s32 %s24, %s50
      %s110 = ssub.s32 %s25, %s46
      %s111 = sor.u32 %s109, %s110
      %s112 = ssub.s32 %s26, %s42
      %s113 = sor.u32 %s111, %s112
      %p114 = scmp.eq.s32.totalorder %s113, 0
      %s116 = sadd.s32 %s115, 1
      %s117 = scalar_select %p114, %s115, %s116
      %p120 = pneg %p114
      %p121 = scmp.eq.s32.totalorder %s17, 1
      %p122 = por %p120, %p121
      %p123 = scmp.ne.s32.totalorder %s115, %s118
      %p124 = scmp.eq.s32.totalorder %s17, 0
      %p125 = por %p123, %p124
      %p126 = scmp.ne.s32.totalorder %s115, %s118
      %p127 = scmp.eq.s32.totalorder %s22, 1
      %p128 = por %p126, %p127
      %p129 = scmp.ne.s32.totalorder %s118, %s119
      %p130 = scmp.eq.s32.totalorder %s22, 0
      %p131 = por %p129, %p130
      %p132 = scmp.ne.s32.totalorder %s118, %s119
      %p133 = scmp.eq.s32.totalorder %s23, 1
      %p134 = por %p132, %p133
      %p136 = scmp.ne.s32.totalorder %s119, %s135
      %p137 = scmp.eq.s32.totalorder %s23, 0
      %p138 = por %p136, %p137
      %p139 = scmp.le.s32.totalorder 1, %s17
      %p140 = scmp.lt.s32.totalorder %s17, 3
      %p141 = pnand %p139, %p140
      %p142 = pneg %p141
      // Predicated region
      $region9: #{tpu_custom_call.1} parent=5 // pred_check
        _
      $region10: #{tpu_custom_call.1} parent=5 // pred_check_branch
        %144 = sbr.rel (%p141) target = $region12
      $region11: #{tpu_custom_call.1} parent=5 // pred_region
        %s145 = ssub.s32 %s17, 1
      $region12: #{tpu_custom_call.1} parent=5 // pred_fallthru
        _
      %p146 = scmp.lt.s32.totalorder %s17, 2
      // Predicated region
      $region13: #{tpu_custom_call.1} parent=5 // pred_check
        %p147 = pneg %p146
      $region14: #{tpu_custom_call.1} parent=5 // pred_check_branch
        %149 = sbr.rel (%p147) target = $region16
      $region15: #{tpu_custom_call.1} parent=5 // pred_region
        // Predicated region
        $region17: #{tpu_custom_call.1} parent=15 // pred_check
          %p150 = pneg %p67
        $region18: #{tpu_custom_call.1} parent=15 // pred_check_branch
          %152 = sbr.rel (%p150) target = $region20
        $region19: #{tpu_custom_call.1} parent=15 // pred_region
          %s153 = sand.u32 %s57, 1
          %s154 = scalar_lea.sflag [#allocation3], %s153
          %s155 = sand.u32 %s57, 1
          %s156 = smul.addr %s155, 128
          %s157 = scalar_lea.vmem [#allocation2], %s156
          %s158 = smul.u32 16, %s25
          %s160 = ssub.s32 2048, 2048
          %161 = vsyncadd %s154, %s160
          %s162 = sadd.s32 %s27, %s158
          %s163 = smul.addr %s24, 16
          %s164 = sadd.s32 %s162, %s163
          %s165 = smul.addr %s164, 128
          %s166 = scalar_lea.hbm %s0, %s165
          %s167 = sshll.u32 %s157, 4
          %s168 = int_to_ptr.vmem [resolvable:$true] %s167
          %173 = dma.hbm_to_vmem [thread:$0]  %s166, 2048, %s168, %s154, 128, 128, 8
        $region20: #{tpu_custom_call.1} parent=15 // pred_fallthru
          _
        // Predicated region
        $region21: #{tpu_custom_call.1} parent=15 // pred_check
          %p174 = pneg %p95
        $region22: #{tpu_custom_call.1} parent=15 // pred_check_branch
          %176 = sbr.rel (%p174) target = $region24
        $region23: #{tpu_custom_call.1} parent=15 // pred_region
          %s177 = sand.u32 %s85, 1
          %s178 = scalar_lea.sflag [#allocation6], %s177
          %s179 = sand.u32 %s85, 1
          %s180 = smul.addr %s179, 128
          %s181 = scalar_lea.vmem [#allocation5], %s180
          %s183 = ssub.s32 2048, 2048
          %184 = vsyncadd %s178, %s183
          %s185 = smul.addr %s24, 16
          %s186 = sadd.s32 %s26, %s185
          %s187 = smul.addr %s186, 128
          %s188 = scalar_lea.hbm %s1, %s187
          %s189 = sshll.u32 %s181, 4
          %s190 = int_to_ptr.vmem [resolvable:$true] %s189
          %195 = dma.hbm_to_vmem [thread:$0]  %s188, 2048, %s190, %s178, 128, 128, 8
        $region24: #{tpu_custom_call.1} parent=15 // pred_fallthru
          _
      $region16: #{tpu_custom_call.1} parent=5 // pred_fallthru
        _
      %p196 = scmp.le.s32.totalorder 1, %s17
      %p197 = scmp.lt.s32.totalorder %s17, 3
      %p198 = pnand %p196, %p197
      %p199 = pneg %p198
      // Predicated region
      $region25: #{tpu_custom_call.1} parent=5 // pred_check
        _
      $region26: #{tpu_custom_call.1} parent=5 // pred_check_branch
        %201 = sbr.rel (%p198) target = $region28
      $region27: #{tpu_custom_call.1} parent=5 // pred_region
        %s202 = ssub.s32 %s17, 1
        %s203 = sand.u32 %s60, 1
        %s204 = scalar_lea.sflag [#allocation3], %s203
        %s205 = sand.u32 %s60, 1
        %s206 = smul.addr %s205, 128
        %s207 = scalar_lea.vmem [#allocation2], %s206
        // Predicated region
        $region29: #{tpu_custom_call.1} parent=27 // pred_check
          %p208 = pneg %p73
        $region30: #{tpu_custom_call.1} parent=27 // pred_check_branch
          %210 = sbr.rel (%p208) target = $region32
        $region31: #{tpu_custom_call.1} parent=27 // pred_region
          %211 = dma.done %s204, 2048
        $region32: #{tpu_custom_call.1} parent=27 // pred_fallthru
          _
        %s212 = sand.u32 %s88, 1
        %s213 = scalar_lea.sflag [#allocation6], %s212
        %s214 = sand.u32 %s88, 1
        %s215 = smul.addr %s214, 128
        %s216 = scalar_lea.vmem [#allocation5], %s215
        // Predicated region
        $region33: #{tpu_custom_call.1} parent=27 // pred_check
          %p217 = pneg %p101
        $region34: #{tpu_custom_call.1} parent=27 // pred_check_branch
          %219 = sbr.rel (%p217) target = $region36
        $region35: #{tpu_custom_call.1} parent=27 // pred_region
          %220 = dma.done %s213, 2048
        $region36: #{tpu_custom_call.1} parent=27 // pred_fallthru
          _
        %s221 = sand.u32 %s60, 1
        %s222 = scalar_lea.sflag [#allocation3], %s221
        %s223 = sand.u32 %s60, 1
        %s224 = smul.addr %s223, 128
        %s225 = scalar_lea.vmem [#allocation2], %s224
        %p226 = pneg %p73
        %p227 = pneg %p70
        %s228 = sand.u32 %s88, 1
        %s229 = scalar_lea.sflag [#allocation6], %s228
        %s230 = sand.u32 %s88, 1
        %s231 = smul.addr %s230, 128
        %s232 = scalar_lea.vmem [#allocation5], %s231
        %p233 = pneg %p101
        %p234 = pneg %p98
        %p235 = pneg %p131
        %p236 = pneg %p128
        %s237 = sand.u32 %s118, 1
        %s238 = scalar_lea.sflag [#allocation4], %s237
        %s239 = sand.u32 %s118, 1
        %s240 = smul.addr %s239, 128
        %s241 = scalar_lea.vmem [#allocation7], %s240
        %s242 = smul.u32 16, %s29
        %s243 = smul.u32 16, %s29
        %s244 = smul.u32 %s31, 128
        %s245 = scalar_lea.vmem %s216, %s244 [#allocation5]
        %v246 = vld [vmem:[%s245] sm:$0xff]
        %v247 = vld [vmem:[%s245 + $0x8] sm:$0xff]
        %v248 = vld [vmem:[%s245 + $0x10] sm:$0xff]
        %v249 = vld [vmem:[%s245 + $0x18] sm:$0xff]
        %v250 = vld [vmem:[%s245 + $0x20] sm:$0xff]
        %v251 = vld [vmem:[%s245 + $0x28] sm:$0xff]
        %v252 = vld [vmem:[%s245 + $0x30] sm:$0xff]
        %v253 = vld [vmem:[%s245 + $0x38] sm:$0xff]
        %v254 = vld [vmem:[%s245 + $0x40] sm:$0xff]
        %v255 = vld [vmem:[%s245 + $0x48] sm:$0xff]
        %v256 = vld [vmem:[%s245 + $0x50] sm:$0xff]
        %v257 = vld [vmem:[%s245 + $0x58] sm:$0xff]
        %v258 = vld [vmem:[%s245 + $0x60] sm:$0xff]
        %v259 = vld [vmem:[%s245 + $0x68] sm:$0xff]
        %v260 = vld [vmem:[%s245 + $0x70] sm:$0xff]
        %v261 = vld [vmem:[%s245 + $0x78] sm:$0xff]
        %v262 = vld [vmem:[%s207] sm:$0xff]
        %v263 = vld [vmem:[%s207 + $0x8] sm:$0xff]
        %v264 = vld [vmem:[%s207 + $0x10] sm:$0xff]
        %v265 = vld [vmem:[%s207 + $0x18] sm:$0xff]
        %v266 = vld [vmem:[%s207 + $0x20] sm:$0xff]
        %v267 = vld [vmem:[%s207 + $0x28] sm:$0xff]
        %v268 = vld [vmem:[%s207 + $0x30] sm:$0xff]
        %v269 = vld [vmem:[%s207 + $0x38] sm:$0xff]
        %v270 = vld [vmem:[%s207 + $0x40] sm:$0xff]
        %v271 = vld [vmem:[%s207 + $0x48] sm:$0xff]
        %v272 = vld [vmem:[%s207 + $0x50] sm:$0xff]
        %v273 = vld [vmem:[%s207 + $0x58] sm:$0xff]
        %v274 = vld [vmem:[%s207 + $0x60] sm:$0xff]
        %v275 = vld [vmem:[%s207 + $0x68] sm:$0xff]
        %v276 = vld [vmem:[%s207 + $0x70] sm:$0xff]
        %v277 = vld [vmem:[%s207 + $0x78] sm:$0xff]
        %278 = vmatprep.subr.mxu0 0.0
        %279 = vmatpush1.msra.mxu0 %v246
        %280 = vmatprep.subr.mxu0 0.0
        %281 = vmatpush1.msra.mxu0 %v247
        %282 = vmatprep.subr.mxu0 0.0
        %283 = vmatpush1.msra.mxu0 %v248
        %284 = vmatprep.subr.mxu0 0.0
        %285 = vmatpush1.msra.mxu0 %v249
        %286 = vmatprep.subr.mxu0 0.0
        %287 = vmatpush1.msra.mxu0 %v250
        %288 = vmatprep.subr.mxu0 0.0
        %289 = vmatpush1.msra.mxu0 %v251
        %290 = vmatprep.subr.mxu0 0.0
        %291 = vmatpush1.msra.mxu0 %v252
        %292 = vmatprep.subr.mxu0 0.0
        %293 = vmatpush1.msra.mxu0 %v253
        %294 = vmatprep.subr.mxu0 0.0
        %295 = vmatpush1.msra.mxu0 %v254
        %296 = vmatprep.subr.mxu0 0.0
        %297 = vmatpush1.msra.mxu0 %v255
        %298 = vmatprep.subr.mxu0 0.0
        %299 = vmatpush1.msra.mxu0 %v256
        %300 = vmatprep.subr.mxu0 0.0
        %301 = vmatpush1.msra.mxu0 %v257
        %302 = vmatprep.subr.mxu0 0.0
        %303 = vmatpush1.msra.mxu0 %v258
        %304 = vmatprep.subr.mxu0 0.0
        %305 = vmatpush1.msra.mxu0 %v259
        %306 = vmatprep.subr.mxu0 0.0
        %307 = vmatpush1.msra.mxu0 %v260
        %308 = vmatprep.subr.mxu0 0.0
        %309 = vmatpush1.msra.mxu0 %v261
        %310 = vmatprep.subr.mxu0 0.0
        %311 = vmatpush1.msra.mxu0 0.0
        %312 = vmatprep.subr.mxu0 0.0
        %313 = vmatpush1.msra.mxu0 0.0
        %314 = vmatprep.subr.mxu0 0.0
        %315 = vmatpush1.msra.mxu0 0.0
        %316 = vmatprep.subr.mxu0 0.0
        %317 = vmatpush1.msra.mxu0 0.0
        %318 = vmatprep.subr.mxu0 0.0
        %319 = vmatpush1.msra.mxu0 0.0
        %320 = vmatprep.subr.mxu0 0.0
        %321 = vmatpush1.msra.mxu0 0.0
        %322 = vmatprep.subr.mxu0 0.0
        %323 = vmatpush1.msra.mxu0 0.0
        %324 = vmatprep.subr.mxu0 0.0
        %325 = vmatpush1.msra.mxu0 0.0
        %326 = vmatprep.subr.mxu0 0.0
        %327 = vmatpush1.msra.mxu0 0.0
        %328 = vmatprep.subr.mxu0 0.0
        %329 = vmatpush1.msra.mxu0 0.0
        %330 = vmatprep.subr.mxu0 0.0
        %331 = vmatpush1.msra.mxu0 0.0
        %332 = vmatprep.subr.mxu0 0.0
        %333 = vmatpush1.msra.mxu0 0.0
        %334 = vmatprep.subr.mxu0 0.0
        %335 = vmatpush1.msra.mxu0 0.0
        %336 = vmatprep.subr.mxu0 0.0
        %337 = vmatpush1.msra.mxu0 0.0
        %338 = vmatprep.subr.mxu0 0.0
        %339 = vmatpush1.msra.mxu0 0.0
        %340 = vmatprep.subr.mxu0 0.0
        %341 = vmatpush1.msra.mxu0 0.0
        %342 = vmatprep.mubr.f32.mxu0 0.0
        %343 = vmatmul.mubr.f32.gmra.mrb[0].mxu0 %v262
        %v344 = vpop.f32.mrb[0].mxu0
        %v345 = vadd.f32 0.0, %v344
        %v346 = vpop.f32.mrb[0].mxu0
        %347 = vmatprep.mubr.f32.mxu0 0.0
        %348 = vmatmul.mubr.f32.gmra.mrb[0].mxu0 %v263
        %v349 = vpop.f32.mrb[0].mxu0
        %v350 = vadd.f32 0.0, %v349
        %v351 = vpop.f32.mrb[0].mxu0
        %352 = vmatprep.mubr.f32.mxu0 0.0
        %353 = vmatmul.mubr.f32.gmra.mrb[0].mxu0 %v264
        %v354 = vpop.f32.mrb[0].mxu0
        %v355 = vadd.f32 0.0, %v354
        %v356 = vpop.f32.mrb[0].mxu0
        %357 = vmatprep.mubr.f32.mxu0 0.0
        %358 = vmatmul.mubr.f32.gmra.mrb[0].mxu0 %v265
        %v359 = vpop.f32.mrb[0].mxu0
        %v360 = vadd.f32 0.0, %v359
        %v361 = vpop.f32.mrb[0].mxu0
        %362 = vmatprep.mubr.f32.mxu0 0.0
        %363 = vmatmul.mubr.f32.gmra.mrb[0].mxu0 %v266
        %v364 = vpop.f32.mrb[0].mxu0
        %v365 = vadd.f32 0.0, %v364
        %v366 = vpop.f32.mrb[0].mxu0
        %367 = vmatprep.mubr.f32.mxu0 0.0
        %368 = vmatmul.mubr.f32.gmra.mrb[0].mxu0 %v267
        %v369 = vpop.f32.mrb[0].mxu0
        %v370 = vadd.f32 0.0, %v369
        %v371 = vpop.f32.mrb[0].mxu0
        %372 = vmatprep.mubr.f32.mxu0 0.0
        %373 = vmatmul.mubr.f32.gmra.mrb[0].mxu0 %v268
        %v374 = vpop.f32.mrb[0].mxu0
        %v375 = vadd.f32 0.0, %v374
        %v376 = vpop.f32.mrb[0].mxu0
        %377 = vmatprep.mubr.f32.mxu0 0.0
        %378 = vmatmul.mubr.f32.gmra.mrb[0].mxu0 %v269
        %v379 = vpop.f32.mrb[0].mxu0
        %v380 = vadd.f32 0.0, %v379
        %v381 = vpop.f32.mrb[0].mxu0
        %382 = vmatprep.mubr.f32.mxu0 0.0
        %383 = vmatmul.mubr.f32.gmra.mrb[0].mxu0 %v270
        %v384 = vpop.f32.mrb[0].mxu0
        %v385 = vadd.f32 0.0, %v384
        %v386 = vpop.f32.mrb[0].mxu0
        %387 = vmatprep.mubr.f32.mxu0 0.0
        %388 = vmatmul.mubr.f32.gmra.mrb[0].mxu0 %v271
        %v389 = vpop.f32.mrb[0].mxu0
        %v390 = vadd.f32 0.0, %v389
        %v391 = vpop.f32.mrb[0].mxu0
        %392 = vmatprep.mubr.f32.mxu0 0.0
        %393 = vmatmul.mubr.f32.gmra.mrb[0].mxu0 %v272
        %v394 = vpop.f32.mrb[0].mxu0
        %v395 = vadd.f32 0.0, %v394
        %v396 = vpop.f32.mrb[0].mxu0
        %397 = vmatprep.mubr.f32.mxu0 0.0
        %398 = vmatmul.mubr.f32.gmra.mrb[0].mxu0 %v273
        %v399 = vpop.f32.mrb[0].mxu0
        %v400 = vadd.f32 0.0, %v399
        %v401 = vpop.f32.mrb[0].mxu0
        %402 = vmatprep.mubr.f32.mxu0 0.0
        %403 = vmatmul.mubr.f32.gmra.mrb[0].mxu0 %v274
        %v404 = vpop.f32.mrb[0].mxu0
        %v405 = vadd.f32 0.0, %v404
        %v406 = vpop.f32.mrb[0].mxu0
        %407 = vmatprep.mubr.f32.mxu0 0.0
        %408 = vmatmul.mubr.f32.gmra.mrb[0].mxu0 %v275
        %v409 = vpop.f32.mrb[0].mxu0
        %v410 = vadd.f32 0.0, %v409
        %v411 = vpop.f32.mrb[0].mxu0
        %412 = vmatprep.mubr.f32.mxu0 0.0
        %413 = vmatmul.mubr.f32.gmra.mrb[0].mxu0 %v276
        %v414 = vpop.f32.mrb[0].mxu0
        %v415 = vadd.f32 0.0, %v414
        %v416 = vpop.f32.mrb[0].mxu0
        %417 = vmatprep.mubr.f32.mxu0 0.0
        %418 = vmatmul.mubr.f32.gmra.mrb[0].mxu0 %v277
        %v419 = vpop.f32.mrb[0].mxu0
        %v420 = vadd.f32 0.0, %v419
        %v421 = vpop.f32.mrb[0].mxu0
        %422 = vdwg.mxu0
        %p423 = scmp.eq.s32.totalorder %s31, 0
        // Predicated region
        $region37: #{tpu_custom_call.1} parent=27 // pred_check
          %p424 = pneg %p423
        $region38: #{tpu_custom_call.1} parent=27 // pred_check_branch
          %426 = sbr.rel (%p424) target = $region40
        $region39: #{tpu_custom_call.1} parent=27 // pred_region
          %427 = vst [vmem:[%s241] sm:$0xff] %v345
          %428 = vst [vmem:[%s241 + $0x8] sm:$0xff] %v350
          %429 = vst [vmem:[%s241 + $0x10] sm:$0xff] %v355
          %430 = vst [vmem:[%s241 + $0x18] sm:$0xff] %v360
          %431 = vst [vmem:[%s241 + $0x20] sm:$0xff] %v365
          %432 = vst [vmem:[%s241 + $0x28] sm:$0xff] %v370
          %433 = vst [vmem:[%s241 + $0x30] sm:$0xff] %v375
          %434 = vst [vmem:[%s241 + $0x38] sm:$0xff] %v380
          %435 = vst [vmem:[%s241 + $0x40] sm:$0xff] %v385
          %436 = vst [vmem:[%s241 + $0x48] sm:$0xff] %v390
          %437 = vst [vmem:[%s241 + $0x50] sm:$0xff] %v395
          %438 = vst [vmem:[%s241 + $0x58] sm:$0xff] %v400
          %439 = vst [vmem:[%s241 + $0x60] sm:$0xff] %v405
          %440 = vst [vmem:[%s241 + $0x68] sm:$0xff] %v410
          %441 = vst [vmem:[%s241 + $0x70] sm:$0xff] %v415
          %442 = vst [vmem:[%s241 + $0x78] sm:$0xff] %v420
        $region40: #{tpu_custom_call.1} parent=27 // pred_fallthru
          _
        %p443 = scmp.gt.s32.totalorder %s31, 0
        // Predicated region
        $region41: #{tpu_custom_call.1} parent=27 // pred_check
          %p444 = pneg %p443
        $region42: #{tpu_custom_call.1} parent=27 // pred_check_branch
          %446 = sbr.rel (%p444) target = $region44
        $region43: #{tpu_custom_call.1} parent=27 // pred_region
          %v447 = vld [vmem:[%s241] sm:$0xff]
          %v448 = vld [vmem:[%s241 + $0x8] sm:$0xff]
          %v449 = vld [vmem:[%s241 + $0x10] sm:$0xff]
          %v450 = vld [vmem:[%s241 + $0x18] sm:$0xff]
          %v451 = vld [vmem:[%s241 + $0x20] sm:$0xff]
          %v452 = vld [vmem:[%s241 + $0x28] sm:$0xff]
          %v453 = vld [vmem:[%s241 + $0x30] sm:$0xff]
          %v454 = vld [vmem:[%s241 + $0x38] sm:$0xff]
          %v455 = vld [vmem:[%s241 + $0x40] sm:$0xff]
          %v456 = vld [vmem:[%s241 + $0x48] sm:$0xff]
          %v457 = vld [vmem:[%s241 + $0x50] sm:$0xff]
          %v458 = vld [vmem:[%s241 + $0x58] sm:$0xff]
          %v459 = vld [vmem:[%s241 + $0x60] sm:$0xff]
          %v460 = vld [vmem:[%s241 + $0x68] sm:$0xff]
          %v461 = vld [vmem:[%s241 + $0x70] sm:$0xff]
          %v462 = vld [vmem:[%s241 + $0x78] sm:$0xff]
          %v463 = vadd.f32 %v447, %v345
          %v464 = vadd.f32 %v448, %v350
          %v465 = vadd.f32 %v449, %v355
          %v466 = vadd.f32 %v450, %v360
          %v467 = vadd.f32 %v451, %v365
          %v468 = vadd.f32 %v452, %v370
          %v469 = vadd.f32 %v453, %v375
          %v470 = vadd.f32 %v454, %v380
          %v471 = vadd.f32 %v455, %v385
          %v472 = vadd.f32 %v456, %v390
          %v473 = vadd.f32 %v457, %v395
          %v474 = vadd.f32 %v458, %v400
          %v475 = vadd.f32 %v459, %v405
          %v476 = vadd.f32 %v460, %v410
          %v477 = vadd.f32 %v461, %v415
          %v478 = vadd.f32 %v462, %v420
          %479 = vst [vmem:[%s241] sm:$0xff] %v463
          %480 = vst [vmem:[%s241 + $0x8] sm:$0xff] %v464
          %481 = vst [vmem:[%s241 + $0x10] sm:$0xff] %v465
          %482 = vst [vmem:[%s241 + $0x18] sm:$0xff] %v466
          %483 = vst [vmem:[%s241 + $0x20] sm:$0xff] %v467
          %484 = vst [vmem:[%s241 + $0x28] sm:$0xff] %v468
          %485 = vst [vmem:[%s241 + $0x30] sm:$0xff] %v469
          %486 = vst [vmem:[%s241 + $0x38] sm:$0xff] %v470
          %487 = vst [vmem:[%s241 + $0x40] sm:$0xff] %v471
          %488 = vst [vmem:[%s241 + $0x48] sm:$0xff] %v472
          %489 = vst [vmem:[%s241 + $0x50] sm:$0xff] %v473
          %490 = vst [vmem:[%s241 + $0x58] sm:$0xff] %v474
          %491 = vst [vmem:[%s241 + $0x60] sm:$0xff] %v475
          %492 = vst [vmem:[%s241 + $0x68] sm:$0xff] %v476
          %493 = vst [vmem:[%s241 + $0x70] sm:$0xff] %v477
          %494 = vst [vmem:[%s241 + $0x78] sm:$0xff] %v478
        $region44: #{tpu_custom_call.1} parent=27 // pred_fallthru
          _
        %s495 = sand.u32 %s118, 1
        %s496 = scalar_lea.sflag [#allocation4], %s495
        %s497 = sand.u32 %s118, 1
        %s498 = smul.addr %s497, 128
        %s499 = scalar_lea.vmem [#allocation7], %s498
        // Predicated region
        $region45: #{tpu_custom_call.1} parent=27 // pred_check
          %p500 = pneg %p128
        $region46: #{tpu_custom_call.1} parent=27 // pred_check_branch
          %502 = sbr.rel (%p500) target = $region48
        $region47: #{tpu_custom_call.1} parent=27 // pred_region
          %s503 = smul.u32 16, %s29
          %s505 = ssub.s32 2048, 2048
          %506 = vsyncadd %s496, %s505
          %s507 = sadd.s32 %s30, %s503
          %s508 = smul.addr %s28, 16
          %s509 = sadd.s32 %s507, %s508
          %s510 = smul.addr %s509, 128
          %s511 = scalar_lea.hbm %s2, %s510
          %s512 = sshll.u32 %s499, 4
          %s513 = int_to_ptr.vmem [resolvable:$true] %s512
          %518 = dma.vmem_to_hbm [thread:$0]  %s513, 2048, %s511, %s496, 128, 128, 8
        $region48: #{tpu_custom_call.1} parent=27 // pred_fallthru
          _
      $region28: #{tpu_custom_call.1} parent=5 // pred_fallthru
        _
      %p519 = scmp.le.s32.totalorder 2, %s17
      // Predicated region
      $region49: #{tpu_custom_call.1} parent=5 // pred_check
        %p520 = pneg %p519
      $region50: #{tpu_custom_call.1} parent=5 // pred_check_branch
        %522 = sbr.rel (%p520) target = $region52
      $region51: #{tpu_custom_call.1} parent=5 // pred_region
        %s523 = ssub.s32 %s17, 2
        // Predicated region
        $region53: #{tpu_custom_call.1} parent=51 // pred_check
          %p524 = pneg %p134
        $region54: #{tpu_custom_call.1} parent=51 // pred_check_branch
          %526 = sbr.rel (%p524) target = $region56
        $region55: #{tpu_custom_call.1} parent=51 // pred_region
          %s527 = sand.u32 %s119, 1
          %s528 = scalar_lea.sflag [#allocation4], %s527
          %s529 = sand.u32 %s119, 1
          %s530 = smul.addr %s529, 128
          %s531 = scalar_lea.vmem [#allocation7], %s530
          %532 = dma.done %s528, 2048
        $region56: #{tpu_custom_call.1} parent=51 // pred_fallthru
          _
      $region52: #{tpu_custom_call.1} parent=5 // pred_fallthru
        _
    $region6: #{tpu_custom_call.1} parent=1 // loop_footer
      %s21 = sadd.s32 1, %s17
    $region7: #{tpu_custom_call.1} parent=1 // loop_footer_branch
      %16 = sbr.rel target = $region3
    $region8: #{tpu_custom_call.1} parent=1 // loop_exit
      _
    %533 = vsyncpa [#allocation3], 1
    %s534 = scalar_lea.sflag [#allocation3], 1
    %535 = vsyncpa %s534, 1
    %536 = vsyncpa [#allocation6], 1
    %s537 = scalar_lea.sflag [#allocation6], 1
    %538 = vsyncpa %s537, 1
    %539 = vsyncpa [#allocation4], 1
    %s540 = scalar_lea.sflag [#allocation4], 1
    %541 = vsyncpa %s540, 1

</llo_original>
